<compile_context>
chip_gen: v6e
topology: v6e:2x2x1
jax: 0.10.0
libtpu: 0.0.40
codegen_flags: <defaults>
</compile_context>

<pallas_src>
import jax
import jax.numpy as jnp
from jax.experimental import pallas as pl
from jax.experimental.pallas import tpu as pltpu


_MAX_TILE_LANES = 8192        # no measurable benefit beyond this for streaming
_VMEM_BUDGET = 20 << 20       # double-buffered in+out stream budget (all gens)


def _nlinear_kernel(x_ref, w_ref, c_ref, b_ref, o_ref):
    # x_ref: (seq_len, tile)     w_ref: (pred_len, seq_len)
    # c_ref: (pred_len, 1) f32   b_ref: (pred_len, 1) f32
    # o_ref: (pred_len, tile)
    s = x_ref.shape[0]
    y = jnp.dot(w_ref[...], x_ref[...], preferred_element_type=jnp.float32)
    last = x_ref[s - 1:s, :].astype(jnp.float32)            # (1, tile), f32 residual
    y = y + c_ref[...] * last + b_ref[...]                   # seq_last add-back + bias
    o_ref[...] = jnp.maximum(y, 0.0).astype(o_ref.dtype)     # clip(min=0)


def _pick_tile(n_lanes, seq_len, pred_len, x_bytes, out_bytes):
    """Lane-tile width: multiple of 128 (or the full extent), VMEM-budgeted."""
    per_lane = 2 * (seq_len * x_bytes + pred_len * out_bytes)   # double-buffered in+out
    fit = max(128, (_VMEM_BUDGET // per_lane) // 128 * 128)
    max_tile = min(_MAX_TILE_LANES, fit)
    n128 = pl.cdiv(n_lanes, 128) * 128
    if n128 <= max_tile:
        return n_lanes, 1                       # one block covering the full extent
    num = pl.cdiv(n128, max_tile)
    tile = pl.cdiv(n128 // 128, num) * 128      # balanced, 128-aligned tiles
    return tile, pl.cdiv(n_lanes, tile)


def _nlinear_call(x3, w, c, b2, pred_len, tile, n_tiles, out_dtype):
    """x3: [Bg, seq_len, N] -> [Bg, pred_len, N] via grid (Bg, n_tiles)."""
    Bg, seq_len, N = x3.shape
    xb = jnp.dtype(x3.dtype).itemsize
    ob = jnp.dtype(out_dtype).itemsize
    wb = jnp.dtype(w.dtype).itemsize

    flops = 2 * Bg * pred_len * seq_len * N + 4 * Bg * pred_len * N
    bytes_accessed = (Bg * seq_len * N * xb + Bg * pred_len * N * ob
                      + pred_len * seq_len * wb + 8 * pred_len)
    vmem_need = (2 * tile * (seq_len * xb + pred_len * ob)
                 + 2 * pred_len * seq_len * wb + 16 * pred_len)
    vmem_limit = int(min(max(2 * vmem_need, 32 << 20), 48 << 20))

    return pl.pallas_call(
        _nlinear_kernel,
        out_shape=jax.ShapeDtypeStruct((Bg, pred_len, N), out_dtype),
        grid_spec=pltpu.PrefetchScalarGridSpec(
            num_scalar_prefetch=0,
            grid=(Bg, n_tiles),
            in_specs=[
                pl.BlockSpec((None, seq_len, tile), lambda i, j: (i, 0, j)),
                pl.BlockSpec((pred_len, seq_len), lambda i, j: (0, 0)),   # resident
                pl.BlockSpec((pred_len, 1), lambda i, j: (0, 0)),          # resident
                pl.BlockSpec((pred_len, 1), lambda i, j: (0, 0)),          # resident
            ],
            out_specs=pl.BlockSpec((None, pred_len, tile), lambda i, j: (i, 0, j)),
        ),
        compiler_params=pltpu.CompilerParams(
            dimension_semantics=("parallel", "parallel"),
            vmem_limit_bytes=vmem_limit),
        cost_estimate=pl.CostEstimate(
            flops=flops, transcendentals=0, bytes_accessed=bytes_accessed),
    )(x3, w, c, b2)


def nlinear_forward(x, w, b):
    """NLinear forward.  x: [B, seq_len, C]; w: [pred_len, seq_len]; b: [pred_len].

    MXU input dtype follows x.dtype (pass bf16 x to halve HBM traffic); the
    seq_last residual, bias and accumulation stay f32; output dtype == x.dtype.
    """
    B, seq_len, C = x.shape
    pred_len = w.shape[0]
    out_dtype = x.dtype

    w_c = w.astype(x.dtype)                                              # MXU operand
    c = (1.0 - jnp.sum(w.astype(jnp.float32), axis=1)).reshape(pred_len, 1)
    b2 = b.astype(jnp.float32).reshape(pred_len, 1)

    xb = jnp.dtype(x.dtype).itemsize
    ob = jnp.dtype(out_dtype).itemsize

    if C >= 128:
        # Native [B, seq_len, C] layout: zero wrapper transpose/pad/slice passes.
        tile_c, c_tiles = _pick_tile(C, seq_len, pred_len, xb, ob)
        if B == 1 and c_tiles == 1 and C % 256 == 0:
            tile_c, c_tiles = C // 2, 2      # give v7x's second TensorCore work
        return _nlinear_call(x, w_c, c, b2, pred_len, tile_c, c_tiles, out_dtype)

    # Small-C fallback: flatten to lane-dense [seq_len, B*C] (row s of xt is
    # x[:, s, :] flattened, so the kernel's last-row residual stays correct).
    n = B * C
    xt = jnp.transpose(x, (1, 0, 2)).reshape(seq_len, n)
    n128 = pl.cdiv(n, 128) * 128
    tile_n, n_tiles = _pick_tile(n128, seq_len, pred_len, xb, ob)
    n_pad = tile_n * n_tiles
    if n_pad != n:
        xt = jnp.pad(xt, ((0, 0), (0, n_pad - n)))
    y3 = _nlinear_call(xt[None], w_c, c, b2, pred_len, tile_n, n_tiles, out_dtype)
    y = y3[0, :, :n].reshape(pred_len, B, C)
    return jnp.transpose(y, (1, 0, 2))


def nlinear_reference(x, w, b):
    seq_last = x[:, -1:, :]
    xc = x - seq_last
    y = jnp.einsum("bsc,ps->bpc", xc, w) + b[None, :, None]
    y = y + seq_last
    return jnp.clip(y, 0.0)


def _make_inputs(key, B, seq_len, pred_len, C):
    kx, kw, kb = jax.random.split(key, 3)
    x = jax.random.normal(kx, (B, seq_len, C), dtype=jnp.float32)
    bound = 1.0 / (seq_len ** 0.5)
    w = jax.random.uniform(kw, (pred_len, seq_len), jnp.float32, -bound, bound)
    b = jax.random.uniform(kb, (pred_len,), jnp.float32, -bound, bound)
    return x, w, b


if __name__ == "__main__":
    key = jax.random.PRNGKey(0)
    k1, k2 = jax.random.split(key)

    # --- Test 1: small shapes (C < 128 -> flattened lane-dense fallback). ---
    B, seq_len, pred_len, C = 2, 8, 4, 16
    x, w, b = _make_inputs(k1, B, seq_len, pred_len, C)
    out = jax.block_until_ready(nlinear_forward(x, w, b))
    ref = nlinear_reference(x, w, b)
    assert out.shape == (B, pred_len, C)
    assert jnp.allclose(out, ref, atol=1e-4, rtol=1e-4), "mismatch (small, f32)"

    # --- Test 2: C >= 128 -> native [B, seq, C] layout, no wrapper passes. ---
    B, seq_len, pred_len, C = 3, 96, 24, 321
    x, w, b = _make_inputs(k2, B, seq_len, pred_len, C)
    out = jax.block_until_ready(nlinear_forward(x, w, b))
    ref = nlinear_reference(x, w, b)
    assert out.shape == (B, pred_len, C)
    assert jnp.allclose(out, ref, atol=1e-4, rtol=1e-4), "mismatch (large, f32)"

    # --- Test 3: caller-provided bf16 input (halves X read / Y write traffic);
    #     residual + bias + accumulation stay f32 inside the kernel. ---
    out_bf16 = jax.block_until_ready(nlinear_forward(x.astype(jnp.bfloat16), w, b))
    assert out_bf16.shape == (B, pred_len, C)
    assert out_bf16.dtype == jnp.bfloat16
    assert jnp.allclose(out_bf16.astype(jnp.float32), ref,
                        atol=1e-1, rtol=1e-1), "mismatch (bf16)"

    print("KERNEL_OK")
</pallas_src>

<mosaic_0001>
module attributes {stable_mosaic.version = 11 : i64} {
  func.func @_nlinear_kernel(%arg0: i32, %arg1: i32, %arg2: memref<1x8x128xf32, #tpu.memory_space<vmem>>, %arg3: memref<4x8xf32, #tpu.memory_space<vmem>>, %arg4: memref<4x1xf32, #tpu.memory_space<vmem>>, %arg5: memref<4x1xf32, #tpu.memory_space<vmem>>, %arg6: memref<1x4x128xf32, #tpu.memory_space<vmem>>) attributes {dimension_semantics = [#tpu.dimension_semantics<parallel>, #tpu.dimension_semantics<parallel>], iteration_bounds = array<i64: 1, 1>, scalar_prefetch = 0 : i64, scratch_operands = 0 : i64, tpu.core_type = #tpu.core_type<tc>, window_params = [{transform_indices = @transform_0, window_bounds = array<i64: 1, 8, 128>}, {pipeline_mode = #tpu.pipeline_mode<synchronous>, transform_indices = @transform_1, window_bounds = array<i64: 4, 8>}, {pipeline_mode = #tpu.pipeline_mode<synchronous>, transform_indices = @transform_2, window_bounds = array<i64: 4, 1>}, {pipeline_mode = #tpu.pipeline_mode<synchronous>, transform_indices = @transform_3, window_bounds = array<i64: 4, 1>}, {transform_indices = @transform_4, window_bounds = array<i64: 1, 4, 128>}]} {
    %c0 = arith.constant 0 : index
    %c0_0 = arith.constant 0 : index
    %0 = vector.load %arg3[%c0, %c0_0] : memref<4x8xf32, #tpu.memory_space<vmem>>, vector<4x8xf32>
    %c0_1 = arith.constant 0 : index
    %c0_2 = arith.constant 0 : index
    %c0_3 = arith.constant 0 : index
    %1 = vector.load %arg2[%c0_1, %c0_2, %c0_3] : memref<1x8x128xf32, #tpu.memory_space<vmem>>, vector<1x8x128xf32>
    %2 = vector.shape_cast %1 : vector<1x8x128xf32> to vector<8x128xf32>
    %cst = arith.constant dense<0.000000e+00> : vector<4x128xf32>
    %3 = tpu.matmul %0, %2, %cst {dimension_numbers = #tpu.dot_dimension_numbers<[1], [0], [0], [1], [0, 0, 1, 1], [], []>} : vector<4x8xf32>, vector<8x128xf32>, vector<4x128xf32> -> vector<4x128xf32>
    %c0_4 = arith.constant 0 : index
    %c7 = arith.constant 7 : index
    %c0_5 = arith.constant 0 : index
    %4 = vector.load %arg2[%c0_4, %c7, %c0_5] : memref<1x8x128xf32, #tpu.memory_space<vmem>>, vector<1x1x128xf32>
    %5 = vector.shape_cast %4 : vector<1x1x128xf32> to vector<1x128xf32>
    %c0_6 = arith.constant 0 : index
    %c0_7 = arith.constant 0 : index
    %6 = vector.load %arg4[%c0_6, %c0_7] : memref<4x1xf32, #tpu.memory_space<vmem>>, vector<4x1xf32>
    %7 = vector.broadcast %6 : vector<4x1xf32> to vector<4x128xf32>
    %8 = vector.broadcast %5 : vector<1x128xf32> to vector<4x128xf32>
    %9 = arith.mulf %7, %8 : vector<4x128xf32>
    %10 = arith.addf %3, %9 : vector<4x128xf32>
    %c0_8 = arith.constant 0 : index
    %c0_9 = arith.constant 0 : index
    %11 = vector.load %arg5[%c0_8, %c0_9] : memref<4x1xf32, #tpu.memory_space<vmem>>, vector<4x1xf32>
    %12 = vector.broadcast %11 : vector<4x1xf32> to vector<4x128xf32>
    %13 = arith.addf %10, %12 : vector<4x128xf32>
    %cst_10 = arith.constant 0.000000e+00 : f32
    %14 = vector.broadcast %cst_10 : f32 to vector<4x128xf32>
    %15 = arith.maximumf %13, %14 : vector<4x128xf32>
    %c0_11 = arith.constant 0 : index
    %c0_12 = arith.constant 0 : index
    %c0_13 = arith.constant 0 : index
    %16 = vector.load %arg6[%c0_11, %c0_12, %c0_13] : memref<1x4x128xf32, #tpu.memory_space<vmem>>, vector<1x4x128xf32>
    %17 = vector.shape_cast %16 : vector<1x4x128xf32> to vector<4x128xf32>
    %18 = vector.shape_cast %15 : vector<4x128xf32> to vector<1x4x128xf32>
    tpu.vector_store %arg6[%c0_11, %c0_12, %c0_13], %18 {strides = array<i32>} : memref<1x4x128xf32, #tpu.memory_space<vmem>>, vector<1x4x128xf32>,
    return
  }
  func.func @transform_0(%arg0: i32, %arg1: i32) -> (i32, i32, i32) {
    %c0_i32 = arith.constant 0 : i32
    %c0_i32_0 = arith.constant 0 : i32
    return %arg0, %c0_i32, %arg1 : i32, i32, i32
  }
  func.func @transform_1(%arg0: i32, %arg1: i32) -> (i32, i32) {
    %c0_i32 = arith.constant 0 : i32
    %c0_i32_0 = arith.constant 0 : i32
    %c0_i32_1 = arith.constant 0 : i32
    return %c0_i32, %c0_i32_0 : i32, i32
  }
  func.func @transform_2(%arg0: i32, %arg1: i32) -> (i32, i32) {
    %c0_i32 = arith.constant 0 : i32
    %c0_i32_0 = arith.constant 0 : i32
    %c0_i32_1 = arith.constant 0 : i32
    return %c0_i32, %c0_i32_0 : i32, i32
  }
  func.func @transform_3(%arg0: i32, %arg1: i32) -> (i32, i32) {
    %c0_i32 = arith.constant 0 : i32
    %c0_i32_0 = arith.constant 0 : i32
    %c0_i32_1 = arith.constant 0 : i32
    return %c0_i32, %c0_i32_0 : i32, i32
  }
  func.func @transform_4(%arg0: i32, %arg1: i32) -> (i32, i32, i32) {
    %c0_i32 = arith.constant 0 : i32
    %c0_i32_0 = arith.constant 0 : i32
    return %arg0, %c0_i32, %arg1 : i32, i32, i32
  }
}

</mosaic_0001>

<llo_original>
// kernel: tpu_custom_call.1
$region0: #{tpu_custom_call.1}
  #allocation0 [shape = 'u32[]', space=smem, size = 0x4, offset = 0x4, fixed_abs, tag = 'smem constant byte address 0x4 - core index']
  #allocation1 [shape = 'u32[144,128]{1,0:T(1,128)}', space=vmem, size = 0x12000, scoped, tag = 'internal scratch']
  %s0 = inlined_call_operand.vmem [shape: f32[1,8,128], index: 0, kind: input, shape index: {}]
  %s1 = inlined_call_operand.hbm [shape: f32[4,8], index: 1, kind: input, shape index: {}]
  %s2 = inlined_call_operand.vmem [shape: f32[4,1], index: 2, kind: input, shape index: {}]
  %s3 = inlined_call_operand.vmem [shape: f32[4,1], index: 3, kind: input, shape index: {}]
  %s4 = inlined_call_operand.hbm [shape: f32[1,4,128], index: 4, kind: output, shape index: {}]
  %s5 = sld [smem:[#allocation0]]
  $region30: #{tpu_custom_call.1} parent=0
    _
  %s7 = ssub.s32 1, %s5
  %s8 = scalar_select 0, %s7, %s5
  $region1: #{tpu_custom_call.1} parent=0
    #allocation2 [shape = 'u8[2048]{0}', space=vmem, size = 0x800, scoped, tag = 'input window, operand 1, single buffered']
    #allocation3 [shape = 's32[1]{0}', space=sflag, size = 0x4, scoped, tag = 'scoped memory for tpu_custom_call.1']
    #allocation4 [shape = 's32[1]{0}', space=sflag, size = 0x4, scoped, tag = 'scoped memory for tpu_custom_call.1']
    #allocation5 [shape = 'u8[2048]{0}', space=vmem, size = 0x800, scoped, tag = 'output window, operand 0, single buffered']
    %9 = vsyncpa [#allocation3], 0
    %10 = vsyncpa [#allocation4], 0
    // Predicated region
    $region2: #{tpu_custom_call.1} parent=1 // pred_check
      _
    $region3: #{tpu_custom_call.1} parent=1 // pred_check_branch
      %12 = sbr.rel (0) target = $region5
    $region4: #{tpu_custom_call.1} parent=1 // pred_region
      _
    $region5: #{tpu_custom_call.1} parent=1 // pred_fallthru
      _
    // Predicated region
    $region6: #{tpu_custom_call.1} parent=1 // pred_check
      _
    $region7: #{tpu_custom_call.1} parent=1 // pred_check_branch
      %14 = sbr.rel (0) target = $region9
    $region8: #{tpu_custom_call.1} parent=1 // pred_region
      %s16 = ssub.s32 64, 64
      %17 = vsyncadd [#allocation3], %s16
      %s19 = sshll.u32 [#allocation2], 4
      %s20 = int_to_ptr.vmem [resolvable:$true] %s19
      %22 = dma.hbm_to_vmem [thread:$0]  %s1, 64, %s20, [#allocation3]
    $region9: #{tpu_custom_call.1} parent=1 // pred_fallthru
      _
    // Predicated region
    $region10: #{tpu_custom_call.1} parent=1 // pred_check
      _
    $region11: #{tpu_custom_call.1} parent=1 // pred_check_branch
      %24 = sbr.rel (0) target = $region13
    $region12: #{tpu_custom_call.1} parent=1 // pred_region
      _
    $region13: #{tpu_custom_call.1} parent=1 // pred_fallthru
      _
    // Predicated region
    $region14: #{tpu_custom_call.1} parent=1 // pred_check
      _
    $region15: #{tpu_custom_call.1} parent=1 // pred_check_branch
      %26 = sbr.rel (0) target = $region17
    $region16: #{tpu_custom_call.1} parent=1 // pred_region
      _
    $region17: #{tpu_custom_call.1} parent=1 // pred_fallthru
      _
    // Predicated region
    $region18: #{tpu_custom_call.1} parent=1 // pred_check
      _
    $region19: #{tpu_custom_call.1} parent=1 // pred_check_branch
      %28 = sbr.rel (0) target = $region21
    $region20: #{tpu_custom_call.1} parent=1 // pred_region
      %29 = dma.done [#allocation3], 64
    $region21: #{tpu_custom_call.1} parent=1 // pred_fallthru
      _
    %v30 = vld [vmem:[#allocation2] sm:$0xf]
    %v31 = vld [vmem:[%s0] sm:$0xff]
    %v32 = vld [vmem:[%s0 + $0x7] sm:$0x1]
    %v33 = vld [vmem:[%s2] sm:$0xf]
    %35 = vset.pattern.permute.xlu0 0
    %36 = vperm.xlu0 %35, %v33
    %v37 = vpop.permute.xlu0 %36
    %v39 = vlaneseq
    %v40 = vshrl.u32 %v39, 7
    %v41 = vsub.s32 0, %v40
    %v42 = vrot.slane %v32, %v41
    %v43 = vmul.f32 %v37, %v42
    %vm44 = vcmask 64512
    %v46 = vsel %vm44, %v30, 0
    %48 = vmatprep.subr.mxu0 0.0
    %49 = vmatpush1.msra.mxu0 0.0
    %50 = vmatprep.subr.mxu0 0.0
    %51 = vmatpush1.msra.mxu0 0.0
    %52 = vmatprep.subr.mxu0 0.0
    %53 = vmatpush1.msra.mxu0 0.0
    %54 = vmatprep.subr.mxu0 0.0
    %55 = vmatpush1.msra.mxu0 0.0
    %56 = vmatprep.subr.mxu0 0.0
    %57 = vmatpush1.msra.mxu0 0.0
    %58 = vmatprep.subr.mxu0 0.0
    %59 = vmatpush1.msra.mxu0 0.0
    %60 = vmatprep.subr.mxu0 0.0
    %61 = vmatpush1.msra.mxu0 0.0
    %62 = vmatprep.subr.mxu0 0.0
    %63 = vmatpush1.msra.mxu0 0.0
    %64 = vmatprep.subr.mxu0 0.0
    %65 = vmatpush1.msra.mxu0 0.0
    %66 = vmatprep.subr.mxu0 0.0
    %67 = vmatpush1.msra.mxu0 0.0
    %68 = vmatprep.subr.mxu0 0.0
    %69 = vmatpush1.msra.mxu0 0.0
    %70 = vmatprep.subr.mxu0 0.0
    %71 = vmatpush1.msra.mxu0 0.0
    %72 = vmatprep.subr.mxu0 0.0
    %73 = vmatpush1.msra.mxu0 0.0
    %74 = vmatprep.subr.mxu0 0.0
    %75 = vmatpush1.msra.mxu0 0.0
    %76 = vmatprep.subr.mxu0 0.0
    %77 = vmatpush1.msra.mxu0 0.0
    %78 = vmatprep.subr.mxu0 0.0
    %79 = vmatpush1.msra.mxu0 %v31
    %80 = vmatprep.subr.mxu0 0.0
    %81 = vmatpush2.msra.mxu0 0.0
    %82 = vmatprep.subr.mxu0 0.0
    %83 = vmatpush2.msra.mxu0 0.0
    %84 = vmatprep.subr.mxu0 0.0
    %85 = vmatpush2.msra.mxu0 0.0
    %86 = vmatprep.subr.mxu0 0.0
    %87 = vmatpush2.msra.mxu0 0.0
    %88 = vmatprep.subr.mxu0 0.0
    %89 = vmatpush2.msra.mxu0 0.0
    %90 = vmatprep.subr.mxu0 0.0
    %91 = vmatpush2.msra.mxu0 0.0
    %92 = vmatprep.subr.mxu0 0.0
    %93 = vmatpush2.msra.mxu0 0.0
    %94 = vmatprep.subr.mxu0 0.0
    %95 = vmatpush2.msra.mxu0 0.0
    %96 = vmatprep.subr.mxu0 0.0
    %97 = vmatpush2.msra.mxu0 0.0
    %98 = vmatprep.subr.mxu0 0.0
    %99 = vmatpush2.msra.mxu0 0.0
    %100 = vmatprep.subr.mxu0 0.0
    %101 = vmatpush2.msra.mxu0 0.0
    %102 = vmatprep.subr.mxu0 0.0
    %103 = vmatpush2.msra.mxu0 0.0
    %104 = vmatprep.subr.mxu0 0.0
    %105 = vmatpush2.msra.mxu0 0.0
    %106 = vmatprep.subr.mxu0 0.0
    %107 = vmatpush2.msra.mxu0 0.0
    %108 = vmatprep.subr.mxu0 0.0
    %109 = vmatpush2.msra.mxu0 0.0
    %110 = vmatprep.subr.mxu0 0.0
    %111 = vmatpush2.msra.mxu0 0.0
    %112 = vmatprep.mubr.f32.mxu0 0.0
    %113 = vmatmul.mubr.f32.gmra.mxu0 %v46
    %v114 = vpop.f32.mrf.mxu0
    %v115 = vadd.f32 %v43, %v114
    %v116 = vpop.f32.mrf.mxu0
    %117 = vdwg.mxu0
    %v118 = vld [vmem:[%s3] sm:$0xf]
    %120 = vset.pattern.permute.xlu0 0
    %121 = vperm.xlu0 %120, %v118
    %v122 = vpop.permute.xlu0 %121
    %v124 = vadd.f32 %v115, %v122
    %v125 = vmax.f32 %v124, 0.0
    %126 = vst [vmem:[#allocation5] sm:$0xf] %v125
    // Predicated region
    $region22: #{tpu_custom_call.1} parent=1 // pred_check
      _
    $region23: #{tpu_custom_call.1} parent=1 // pred_check_branch
      %128 = sbr.rel (0) target = $region25
    $region24: #{tpu_custom_call.1} parent=1 // pred_region
      %s130 = ssub.s32 64, 64
      %131 = vsyncadd [#allocation4], %s130
      %s133 = sshll.u32 [#allocation5], 4
      %s134 = int_to_ptr.vmem [resolvable:$true] %s133
      %136 = dma.vmem_to_hbm [thread:$0]  %s134, 64, %s4, [#allocation4]
    $region25: #{tpu_custom_call.1} parent=1 // pred_fallthru
      _
    // Predicated region
    $region26: #{tpu_custom_call.1} parent=1 // pred_check
      _
    $region27: #{tpu_custom_call.1} parent=1 // pred_check_branch
      %138 = sbr.rel (0) target = $region29
    $region28: #{tpu_custom_call.1} parent=1 // pred_region
      %139 = dma.done [#allocation4], 64
    $region29: #{tpu_custom_call.1} parent=1 // pred_fallthru
      _
    %140 = vsyncpa [#allocation3], 1
    %141 = vsyncpa [#allocation4], 1

</llo_original>
